<compile_context>
chip_gen: v7x
topology: tpu7x:2x2x1
jax: 0.10.0
libtpu: 0.0.40
codegen_flags: <defaults>
</compile_context>

<pallas_src>
import functools

import jax
import jax.numpy as jnp
import numpy as np
from jax.experimental import pallas as pl
from jax.experimental.pallas import tpu as pltpu


_LANE = 128
# Spatial rows (of 128 lanes) per grid step.  2048 rows = 256K lanes:
#   inputs/step = (1 + 2*3) * rows * 128 * 4 B ~= 7.3 MiB, double-buffered ~15 MiB,
# leaving comfortable headroom for elementwise intermediates on v7x (64 MiB VMEM).
_MAX_ROWS_PER_STEP = 2048
_TARGET_ROWS_PER_STEP = 2048


def _round_up(x, m):
    return -(-x // m) * m


def _recon_partials_kernel(mask_ref, yp_ref, yt_ref, out_ref, *,
                           n_rows, rows_per_tile, n_channels, ragged):
    """One (batch-tile, row-tile) grid step -> three per-lane partial-sum rows.

    out row 0: sum(|y_true - y_pred|)      over this tile, all channels
    out row 1: sum(b * |y_true - y_pred|)  b = 1 - mask, broadcast over channels
    out row 2: sum(b)                      per pixel (channel repeat applied in glue)
    """
    m = mask_ref[:, 0].astype(jnp.float32)            # (bt, r, 128)
    b = 1.0 - m

    if ragged:
        # Last row-tile reads past the true row count; zero those rows' contribution.
        row0 = pl.program_id(1) * rows_per_tile
        rows = row0 + jax.lax.broadcasted_iota(jnp.int32, (rows_per_tile, _LANE), 0)
        valid = rows < n_rows                          # (r, 128), broadcasts over bt
        b = jnp.where(valid, b, 0.0)

    s_abs_rows = jnp.zeros((rows_per_tile, _LANE), jnp.float32)
    s_msk_rows = jnp.zeros((rows_per_tile, _LANE), jnp.float32)
    for c in range(n_channels):                        # C = 3, unrolled at trace time
        d = jnp.abs(yt_ref[:, c].astype(jnp.float32)
                    - yp_ref[:, c].astype(jnp.float32))   # (bt, r, 128)
        if ragged:
            d = jnp.where(valid, d, 0.0)
        s_abs_rows = s_abs_rows + jnp.sum(d, axis=0)       # (r, 128)
        s_msk_rows = s_msk_rows + jnp.sum(b * d, axis=0)   # (r, 128)
    s_b_rows = jnp.sum(b, axis=0)                          # (r, 128), per pixel

    s_abs = jnp.sum(s_abs_rows, axis=0, keepdims=True)     # (1, 128) per-lane sums
    s_msk = jnp.sum(s_msk_rows, axis=0, keepdims=True)
    s_b = jnp.sum(s_b_rows, axis=0, keepdims=True)
    out_ref[...] = jnp.concatenate([s_abs, s_msk, s_b], axis=0).reshape(1, 1, 3, _LANE)


def reconstruction_loss(mask, y_pred, y_true):
    """Pallas implementation of ReconstructionLoss.forward."""
    B, C, H, W = y_true.shape
    assert y_pred.shape == y_true.shape
    assert mask.shape == (B, 1, H, W), "mask must be (B, 1, H, W)"
    assert C == 3, "reference module hardcodes b.repeat(1, 3, 1, 1)"

    L = H * W
    m2 = mask.reshape(B, 1, L)
    yp2 = y_pred.reshape(B, C, L)
    yt2 = y_true.reshape(B, C, L)

    # The (rows, 128) view below needs L % 128 == 0; for typical image sizes this
    # already holds and the reshape is free.  Otherwise pad by at most 127 elements
    # (mask with 1 => b = 0, images with 0), so the tail adds exactly 0 to every
    # partial sum; the scalar totals below use the ORIGINAL element count.
    l_pad = _round_up(L, _LANE)
    if l_pad != L:
        pad = l_pad - L
        m2 = jnp.pad(m2, ((0, 0), (0, 0), (0, pad)), constant_values=1)
        yp2 = jnp.pad(yp2, ((0, 0), (0, 0), (0, pad)))
        yt2 = jnp.pad(yt2, ((0, 0), (0, 0), (0, pad)))

    n_rows = l_pad // _LANE
    # Free row-major reshape to a sublane/lane-dense layout: last two dims (rows, 128).
    m4 = m2.reshape(B, 1, n_rows, _LANE)
    yp4 = yp2.reshape(B, C, n_rows, _LANE)
    yt4 = yt2.reshape(B, C, n_rows, _LANE)

    # ---- tiling ---------------------------------------------------------------
    if n_rows > _MAX_ROWS_PER_STEP:
        bt = 1
        r = _MAX_ROWS_PER_STEP                      # multiple of 8
    else:
        r = n_rows                                  # full spatial extent per step
        bt = 1
        if B > 1 and n_rows < _TARGET_ROWS_PER_STEP:
            # Fold batch elements so each step moves a few MiB even for small images.
            bt = min(B, max(1, _TARGET_ROWS_PER_STEP // n_rows))
            while B % bt:                           # keep batch blocks exact
                bt -= 1
    num_row_tiles = -(-n_rows // r)
    num_batch_tiles = B // bt

    # v7x megacore: ensure >= 2 parallel grid steps whenever possible.
    if num_batch_tiles * num_row_tiles < 2:
        if bt > 1:
            bt = max(1, bt // 2)
            while B % bt:
                bt -= 1
            num_batch_tiles = B // bt
        elif n_rows >= 16:
            r = _round_up(-(-n_rows // 2), 8)
            num_row_tiles = -(-n_rows // r)

    ragged = (n_rows % r) != 0

    kernel = functools.partial(
        _recon_partials_kernel,
        n_rows=n_rows, rows_per_tile=r, n_channels=C, ragged=ragged)

    partials = pl.pallas_call(
        kernel,
        out_shape=jax.ShapeDtypeStruct(
            (num_batch_tiles, num_row_tiles, 3, _LANE), jnp.float32),
        grid_spec=pltpu.PrefetchScalarGridSpec(
            num_scalar_prefetch=0,
            grid=(num_batch_tiles, num_row_tiles),
            in_specs=[
                pl.BlockSpec((bt, 1, r, _LANE), lambda bi, ti: (bi, 0, ti, 0)),
                pl.BlockSpec((bt, C, r, _LANE), lambda bi, ti: (bi, 0, ti, 0)),
                pl.BlockSpec((bt, C, r, _LANE), lambda bi, ti: (bi, 0, ti, 0)),
            ],
            out_specs=pl.BlockSpec((1, 1, 3, _LANE), lambda bi, ti: (bi, ti, 0, 0)),
        ),
        compiler_params=pltpu.CompilerParams(
            # No cross-step state => both axes shard across v7x's two TensorCores.
            dimension_semantics=("parallel", "parallel"),
            vmem_limit_bytes=48 * 1024 * 1024,
        ),
    )(m4, yp4, yt4)

    # Cheap final reduction of the tiny (nb, nt, 3, 128) partials tensor in JAX glue.
    s_abs = jnp.sum(partials[:, :, 0, :])               # sum |yt - yp|
    s_msk = jnp.sum(partials[:, :, 1, :])               # sum b * |yt - yp|
    sum_b = jnp.float32(C) * jnp.sum(partials[:, :, 2, :])   # b repeated over 3 channels
    n_total = jnp.float32(B * C * H * W)
    sum_1mb = n_total - sum_b                            # sum(1 - b) over repeated tensor

    valid_loss = jnp.where(sum_b > 0, (s_msk / 10.0) / sum_b, 0.0)
    hole_loss = jnp.where(sum_1mb > 0, (s_abs - s_msk) / sum_1mb, 0.0)
    return (hole_loss + valid_loss) / B


def _reference_loss(mask, y_pred, y_true):
    """Pure-JAX mirror of the PyTorch forward for validation."""
    B = y_true.shape[0]
    b = 1.0 - mask.astype(jnp.float32)
    b = jnp.tile(b, (1, 3, 1, 1))
    abs_error = jnp.abs(y_true.astype(jnp.float32) - y_pred.astype(jnp.float32))
    valid_error = b * abs_error / 10.0
    hole_error = (1.0 - b) * abs_error
    sb = jnp.sum(b)
    s1b = jnp.sum(1.0 - b)
    valid_loss = jnp.where(sb > 0, jnp.sum(valid_error) / sb, 0.0)
    hole_loss = jnp.where(s1b > 0, jnp.sum(hole_error) / s1b, 0.0)
    return (hole_loss + valid_loss) / B


if __name__ == "__main__":
    # Case 1: B=2, C=3, H=W=16 (small deterministic example).
    key = jax.random.PRNGKey(0)
    k1, k2, k3 = jax.random.split(key, 3)
    B, C, H, W = 2, 3, 16, 16
    mask = jax.random.bernoulli(k1, p=0.5, shape=(B, 1, H, W)).astype(jnp.float32)
    y_pred = jax.random.normal(k2, (B, C, H, W), dtype=jnp.float32)
    y_true = jax.random.normal(k3, (B, C, H, W), dtype=jnp.float32)

    loss = reconstruction_loss(mask, y_pred, y_true)
    jax.block_until_ready(loss)
    ref = _reference_loss(mask, y_pred, y_true)
    np.testing.assert_allclose(np.asarray(loss), np.asarray(ref), rtol=1e-5, atol=1e-5)

    # Case 2: B=1, H=W=48, bf16 images (upcast in-kernel) — exercises the megacore
    # row split and the in-kernel ragged-row-tile masking path.
    k4, k5, k6 = jax.random.split(jax.random.PRNGKey(1), 3)
    mask2 = jax.random.bernoulli(k4, p=0.3, shape=(1, 1, 48, 48)).astype(jnp.float32)
    y_pred2 = jax.random.normal(k5, (1, 3, 48, 48), dtype=jnp.bfloat16)
    y_true2 = jax.random.normal(k6, (1, 3, 48, 48), dtype=jnp.bfloat16)

    loss2 = reconstruction_loss(mask2, y_pred2, y_true2)
    jax.block_until_ready(loss2)
    ref2 = _reference_loss(mask2, y_pred2, y_true2)
    np.testing.assert_allclose(np.asarray(loss2), np.asarray(ref2), rtol=1e-4, atol=1e-4)

    print("KERNEL_OK")
</pallas_src>

<mosaic_0001>
module attributes {stable_mosaic.version = 11 : i64} {
  func.func @_recon_partials_kernel(%arg0: i32, %arg1: i32, %arg2: memref<1x1x2x128xf32, #tpu.memory_space<vmem>>, %arg3: memref<1x3x2x128xf32, #tpu.memory_space<vmem>>, %arg4: memref<1x3x2x128xf32, #tpu.memory_space<vmem>>, %arg5: memref<1x1x3x128xf32, #tpu.memory_space<vmem>>) attributes {dimension_semantics = [#tpu.dimension_semantics<parallel>, #tpu.dimension_semantics<parallel>], iteration_bounds = array<i64: 2, 1>, scalar_prefetch = 0 : i64, scratch_operands = 0 : i64, tpu.core_type = #tpu.core_type<tc>, window_params = [{transform_indices = @transform_0, window_bounds = array<i64: 1, 1, 2, 128>}, {transform_indices = @transform_1, window_bounds = array<i64: 1, 3, 2, 128>}, {transform_indices = @transform_2, window_bounds = array<i64: 1, 3, 2, 128>}, {transform_indices = @transform_3, window_bounds = array<i64: 1, 1, 3, 128>}]} {
    %c0 = arith.constant 0 : index
    %c0_0 = arith.constant 0 : index
    %c0_1 = arith.constant 0 : index
    %c0_2 = arith.constant 0 : index
    %0 = vector.load %arg2[%c0, %c0_0, %c0_1, %c0_2] : memref<1x1x2x128xf32, #tpu.memory_space<vmem>>, vector<1x1x2x128xf32>
    %1 = vector.shape_cast %0 : vector<1x1x2x128xf32> to vector<1x2x128xf32>
    %cst = arith.constant 1.000000e+00 : f32
    %2 = vector.broadcast %cst : f32 to vector<1x2x128xf32>
    %3 = arith.subf %2, %1 : vector<1x2x128xf32>
    %cst_3 = arith.constant 0.000000e+00 : f32
    %4 = vector.broadcast %cst_3 : f32 to vector<2x128xf32>
    %cst_4 = arith.constant 0.000000e+00 : f32
    %5 = vector.broadcast %cst_4 : f32 to vector<2x128xf32>
    %c0_5 = arith.constant 0 : index
    %c0_6 = arith.constant 0 : index
    %c0_7 = arith.constant 0 : index
    %c0_8 = arith.constant 0 : index
    %6 = vector.load %arg4[%c0_5, %c0_6, %c0_7, %c0_8] : memref<1x3x2x128xf32, #tpu.memory_space<vmem>>, vector<1x1x2x128xf32>
    %7 = vector.shape_cast %6 : vector<1x1x2x128xf32> to vector<1x2x128xf32>
    %c0_9 = arith.constant 0 : index
    %c0_10 = arith.constant 0 : index
    %c0_11 = arith.constant 0 : index
    %c0_12 = arith.constant 0 : index
    %8 = vector.load %arg3[%c0_9, %c0_10, %c0_11, %c0_12] : memref<1x3x2x128xf32, #tpu.memory_space<vmem>>, vector<1x1x2x128xf32>
    %9 = vector.shape_cast %8 : vector<1x1x2x128xf32> to vector<1x2x128xf32>
    %10 = arith.subf %7, %9 : vector<1x2x128xf32>
    %11 = math.absf %10 : vector<1x2x128xf32>
    %cst_13 = arith.constant dense<0.000000e+00> : vector<2x128xf32>
    %12 = vector.multi_reduction <add>, %11, %cst_13 [0] : vector<1x2x128xf32> to vector<2x128xf32>
    %13 = arith.addf %4, %12 : vector<2x128xf32>
    %14 = arith.mulf %3, %11 : vector<1x2x128xf32>
    %cst_14 = arith.constant dense<0.000000e+00> : vector<2x128xf32>
    %15 = vector.multi_reduction <add>, %14, %cst_14 [0] : vector<1x2x128xf32> to vector<2x128xf32>
    %16 = arith.addf %5, %15 : vector<2x128xf32>
    %c0_15 = arith.constant 0 : index
    %c1 = arith.constant 1 : index
    %c0_16 = arith.constant 0 : index
    %c0_17 = arith.constant 0 : index
    %17 = vector.load %arg4[%c0_15, %c1, %c0_16, %c0_17] : memref<1x3x2x128xf32, #tpu.memory_space<vmem>>, vector<1x1x2x128xf32>
    %18 = vector.shape_cast %17 : vector<1x1x2x128xf32> to vector<1x2x128xf32>
    %c0_18 = arith.constant 0 : index
    %c1_19 = arith.constant 1 : index
    %c0_20 = arith.constant 0 : index
    %c0_21 = arith.constant 0 : index
    %19 = vector.load %arg3[%c0_18, %c1_19, %c0_20, %c0_21] : memref<1x3x2x128xf32, #tpu.memory_space<vmem>>, vector<1x1x2x128xf32>
    %20 = vector.shape_cast %19 : vector<1x1x2x128xf32> to vector<1x2x128xf32>
    %21 = arith.subf %18, %20 : vector<1x2x128xf32>
    %22 = math.absf %21 : vector<1x2x128xf32>
    %cst_22 = arith.constant dense<0.000000e+00> : vector<2x128xf32>
    %23 = vector.multi_reduction <add>, %22, %cst_22 [0] : vector<1x2x128xf32> to vector<2x128xf32>
    %24 = arith.addf %13, %23 : vector<2x128xf32>
    %25 = arith.mulf %3, %22 : vector<1x2x128xf32>
    %cst_23 = arith.constant dense<0.000000e+00> : vector<2x128xf32>
    %26 = vector.multi_reduction <add>, %25, %cst_23 [0] : vector<1x2x128xf32> to vector<2x128xf32>
    %27 = arith.addf %16, %26 : vector<2x128xf32>
    %c0_24 = arith.constant 0 : index
    %c2 = arith.constant 2 : index
    %c0_25 = arith.constant 0 : index
    %c0_26 = arith.constant 0 : index
    %28 = vector.load %arg4[%c0_24, %c2, %c0_25, %c0_26] : memref<1x3x2x128xf32, #tpu.memory_space<vmem>>, vector<1x1x2x128xf32>
    %29 = vector.shape_cast %28 : vector<1x1x2x128xf32> to vector<1x2x128xf32>
    %c0_27 = arith.constant 0 : index
    %c2_28 = arith.constant 2 : index
    %c0_29 = arith.constant 0 : index
    %c0_30 = arith.constant 0 : index
    %30 = vector.load %arg3[%c0_27, %c2_28, %c0_29, %c0_30] : memref<1x3x2x128xf32, #tpu.memory_space<vmem>>, vector<1x1x2x128xf32>
    %31 = vector.shape_cast %30 : vector<1x1x2x128xf32> to vector<1x2x128xf32>
    %32 = arith.subf %29, %31 : vector<1x2x128xf32>
    %33 = math.absf %32 : vector<1x2x128xf32>
    %cst_31 = arith.constant dense<0.000000e+00> : vector<2x128xf32>
    %34 = vector.multi_reduction <add>, %33, %cst_31 [0] : vector<1x2x128xf32> to vector<2x128xf32>
    %35 = arith.addf %24, %34 : vector<2x128xf32>
    %36 = arith.mulf %3, %33 : vector<1x2x128xf32>
    %cst_32 = arith.constant dense<0.000000e+00> : vector<2x128xf32>
    %37 = vector.multi_reduction <add>, %36, %cst_32 [0] : vector<1x2x128xf32> to vector<2x128xf32>
    %38 = arith.addf %27, %37 : vector<2x128xf32>
    %cst_33 = arith.constant dense<0.000000e+00> : vector<2x128xf32>
    %39 = vector.multi_reduction <add>, %3, %cst_33 [0] : vector<1x2x128xf32> to vector<2x128xf32>
    %cst_34 = arith.constant dense<0.000000e+00> : vector<128xf32>
    %40 = vector.multi_reduction <add>, %35, %cst_34 [0] : vector<2x128xf32> to vector<128xf32>
    %41 = vector.shape_cast %40 : vector<128xf32> to vector<1x128xf32>
    %cst_35 = arith.constant dense<0.000000e+00> : vector<128xf32>
    %42 = vector.multi_reduction <add>, %38, %cst_35 [0] : vector<2x128xf32> to vector<128xf32>
    %43 = vector.shape_cast %42 : vector<128xf32> to vector<1x128xf32>
    %cst_36 = arith.constant dense<0.000000e+00> : vector<128xf32>
    %44 = vector.multi_reduction <add>, %39, %cst_36 [0] : vector<2x128xf32> to vector<128xf32>
    %45 = vector.shape_cast %44 : vector<128xf32> to vector<1x128xf32>
    %46 = tpu.concatenate %41, %43, %45 in 0 : vector<1x128xf32>, vector<1x128xf32>, vector<1x128xf32> -> vector<3x128xf32>
    %47 = vector.shape_cast %46 : vector<3x128xf32> to vector<1x1x3x128xf32>
    %c0_37 = arith.constant 0 : index
    %c0_38 = arith.constant 0 : index
    %c0_39 = arith.constant 0 : index
    %c0_40 = arith.constant 0 : index
    %48 = vector.load %arg5[%c0_37, %c0_38, %c0_39, %c0_40] : memref<1x1x3x128xf32, #tpu.memory_space<vmem>>, vector<1x1x3x128xf32>
    tpu.vector_store %arg5[%c0_37, %c0_38, %c0_39, %c0_40], %47 {strides = array<i32>} : memref<1x1x3x128xf32, #tpu.memory_space<vmem>>, vector<1x1x3x128xf32>,
    return
  }
  func.func @transform_0(%arg0: i32, %arg1: i32) -> (i32, i32, i32, i32) {
    %c0_i32 = arith.constant 0 : i32
    %c0_i32_0 = arith.constant 0 : i32
    %c0_i32_1 = arith.constant 0 : i32
    return %arg0, %c0_i32, %arg1, %c0_i32_0 : i32, i32, i32, i32
  }
  func.func @transform_1(%arg0: i32, %arg1: i32) -> (i32, i32, i32, i32) {
    %c0_i32 = arith.constant 0 : i32
    %c0_i32_0 = arith.constant 0 : i32
    %c0_i32_1 = arith.constant 0 : i32
    return %arg0, %c0_i32, %arg1, %c0_i32_0 : i32, i32, i32, i32
  }
  func.func @transform_2(%arg0: i32, %arg1: i32) -> (i32, i32, i32, i32) {
    %c0_i32 = arith.constant 0 : i32
    %c0_i32_0 = arith.constant 0 : i32
    %c0_i32_1 = arith.constant 0 : i32
    return %arg0, %c0_i32, %arg1, %c0_i32_0 : i32, i32, i32, i32
  }
  func.func @transform_3(%arg0: i32, %arg1: i32) -> (i32, i32, i32, i32) {
    %c0_i32 = arith.constant 0 : i32
    %c0_i32_0 = arith.constant 0 : i32
    %c0_i32_1 = arith.constant 0 : i32
    return %arg0, %arg1, %c0_i32, %c0_i32_0 : i32, i32, i32, i32
  }
}

</mosaic_0001>

<llo_original>
// kernel: tpu_custom_call.1
$region0: #{tpu_custom_call.1}
  #allocation0 [shape = 'u32[]', space=smem, size = 0x4, offset = 0x4, fixed_abs, tag = 'smem constant byte address 0x4 - core index']
  #allocation1 [shape = 'u32[144,128]{1,0:T(1,128)}', space=vmem, size = 0x12000, scoped, tag = 'internal scratch']
  %s0 = inlined_call_operand.hbm [shape: f32[2,1,2,128], index: 0, kind: input, shape index: {}]
  %s1 = inlined_call_operand.hbm [shape: f32[2,3,2,128], index: 1, kind: input, shape index: {}]
  %s2 = inlined_call_operand.hbm [shape: f32[2,3,2,128], index: 2, kind: input, shape index: {}]
  %s3 = inlined_call_operand.vmem [shape: f32[2,1,3,128], index: 3, kind: output, shape index: {}]
  %s4 = sld [smem:[#allocation0]]
  $region57: #{tpu_custom_call.1} parent=0
    _
  %s6 = ssub.s32 1, %s4
  %s7 = scalar_select 0, %s6, %s4
  $region1: #{tpu_custom_call.1} parent=0
    #allocation2 [shape = 'u8[2048]{0}', space=vmem, size = 0x800, scoped, tag = 'input window, operand 0']
    #allocation3 [shape = 's32[2]{0}', space=sflag, size = 0x8, scoped, tag = 'scoped memory for tpu_custom_call.1']
    #allocation4 [shape = 'u8[6144]{0}', space=vmem, size = 0x1800, scoped, tag = 'input window, operand 1']
    #allocation5 [shape = 's32[2]{0}', space=sflag, size = 0x8, scoped, tag = 'scoped memory for tpu_custom_call.1']
    #allocation6 [shape = 'u8[6144]{0}', space=vmem, size = 0x1800, scoped, tag = 'input window, operand 2']
    %8 = vsyncpa [#allocation3], 0
    %s9 = scalar_lea.sflag [#allocation3], 1
    %10 = vsyncpa %s9, 0
    %11 = vsyncpa [#allocation5], 0
    %s12 = scalar_lea.sflag [#allocation5], 1
    %13 = vsyncpa %s12, 0
    loop: start=0, step=1, limit=4
    $region2: #{tpu_custom_call.1} parent=1 // loop_pre_header
      _
    $region3: #{tpu_custom_call.1} parent=1 // loop_header
      %s15 = sphi 0, %s19
      %p16 = scmp.ge.s32.totalorder %s15, 4
      %s22 = sphi 0, %s34
      %s23 = sphi 0, %s30
      %s24 = sphi 0, %s22
      %s25 = sphi 0, %s23
      %s26 = sphi 0, %s24
      %s27 = sphi 0, %s25
      %s39 = sphi 0, %s41
      %s42 = sphi 0, %s39
      %s43 = sphi 0, %s42
      %s59 = sphi 0, %s43
      %s67 = sphi 0, %s69
      %s70 = sphi 0, %s67
      %s71 = sphi 0, %s70
      %s87 = sphi 0, %s71
      %s95 = sphi 0, %s97
      %s98 = sphi 0, %s95
      %s99 = sphi 0, %s98
      %s115 = sphi 0, %s99
      %s123 = sphi 0, %s125
      %s126 = sphi 0, %s123
      %s127 = sphi 0, %s126
      %s143 = sphi 0, %s127
    $region4: #{tpu_custom_call.1} parent=1 // loop_header_branch
      %18 = sbr.rel (%p16) target = $region8
    $region5: #{tpu_custom_call.1} parent=1 // loop_body
      %s20 = ssub.s32 %s15, 1
      %s21 = ssub.s32 %s15, 2
      %s28 = sadd.s32 1, %s23
      %p29 = scmp.ge.s32.totalorder %s28, 1
      %s30 = scalar_select %p29, 0, %s28
      %s31 = sadd.s32 1, %s22
      %s32 = scalar_select %p29, %s31, %s22
      %p33 = scmp.ge.s32.totalorder %s32, 2
      %s34 = scalar_select %p33, 0, %s32
      %s35 = ssub.s32 %s22, %s34
      %s36 = ssub.s32 %s23, %s30
      %s37 = sor.u32 %s35, %s36
      %p38 = scmp.eq.s32.totalorder %s37, 0
      %s40 = sadd.s32 %s39, 1
      %s41 = scalar_select %p38, %s39, %s40
      %p44 = pneg %p38
      %p45 = scmp.eq.s32.totalorder %s15, 1
      %p46 = por %p44, %p45
      %p47 = scmp.ne.s32.totalorder %s39, %s42
      %p48 = scmp.eq.s32.totalorder %s15, 0
      %p49 = por %p47, %p48
      %p50 = scmp.ne.s32.totalorder %s39, %s42
      %p51 = scmp.eq.s32.totalorder %s20, 1
      %p52 = por %p50, %p51
      %p53 = scmp.ne.s32.totalorder %s42, %s43
      %p54 = scmp.eq.s32.totalorder %s20, 0
      %p55 = por %p53, %p54
      %p56 = scmp.ne.s32.totalorder %s42, %s43
      %p57 = scmp.eq.s32.totalorder %s21, 1
      %p58 = por %p56, %p57
      %p60 = scmp.ne.s32.totalorder %s43, %s59
      %p61 = scmp.eq.s32.totalorder %s21, 0
      %p62 = por %p60, %p61
      %s63 = ssub.s32 %s22, %s34
      %s64 = ssub.s32 %s23, %s30
      %s65 = sor.u32 %s63, %s64
      %p66 = scmp.eq.s32.totalorder %s65, 0
      %s68 = sadd.s32 %s67, 1
      %s69 = scalar_select %p66, %s67, %s68
      %p72 = pneg %p66
      %p73 = scmp.eq.s32.totalorder %s15, 1
      %p74 = por %p72, %p73
      %p75 = scmp.ne.s32.totalorder %s67, %s70
      %p76 = scmp.eq.s32.totalorder %s15, 0
      %p77 = por %p75, %p76
      %p78 = scmp.ne.s32.totalorder %s67, %s70
      %p79 = scmp.eq.s32.totalorder %s20, 1
      %p80 = por %p78, %p79
      %p81 = scmp.ne.s32.totalorder %s70, %s71
      %p82 = scmp.eq.s32.totalorder %s20, 0
      %p83 = por %p81, %p82
      %p84 = scmp.ne.s32.totalorder %s70, %s71
      %p85 = scmp.eq.s32.totalorder %s21, 1
      %p86 = por %p84, %p85
      %p88 = scmp.ne.s32.totalorder %s71, %s87
      %p89 = scmp.eq.s32.totalorder %s21, 0
      %p90 = por %p88, %p89
      %s91 = ssub.s32 %s22, %s34
      %s92 = ssub.s32 %s23, %s30
      %s93 = sor.u32 %s91, %s92
      %p94 = scmp.eq.s32.totalorder %s93, 0
      %s96 = sadd.s32 %s95, 1
      %s97 = scalar_select %p94, %s95, %s96
      %p100 = pneg %p94
      %p101 = scmp.eq.s32.totalorder %s15, 1
      %p102 = por %p100, %p101
      %p103 = scmp.ne.s32.totalorder %s95, %s98
      %p104 = scmp.eq.s32.totalorder %s15, 0
      %p105 = por %p103, %p104
      %p106 = scmp.ne.s32.totalorder %s95, %s98
      %p107 = scmp.eq.s32.totalorder %s20, 1
      %p108 = por %p106, %p107
      %p109 = scmp.ne.s32.totalorder %s98, %s99
      %p110 = scmp.eq.s32.totalorder %s20, 0
      %p111 = por %p109, %p110
      %p112 = scmp.ne.s32.totalorder %s98, %s99
      %p113 = scmp.eq.s32.totalorder %s21, 1
      %p114 = por %p112, %p113
      %p116 = scmp.ne.s32.totalorder %s99, %s115
      %p117 = scmp.eq.s32.totalorder %s21, 0
      %p118 = por %p116, %p117
      %s119 = ssub.s32 %s22, %s34
      %s120 = ssub.s32 %s23, %s30
      %s121 = sor.u32 %s119, %s120
      %p122 = scmp.eq.s32.totalorder %s121, 0
      %s124 = sadd.s32 %s123, 1
      %s125 = scalar_select %p122, %s123, %s124
      %p128 = pneg %p122
      %p129 = scmp.eq.s32.totalorder %s15, 1
      %p130 = por %p128, %p129
      %p131 = scmp.ne.s32.totalorder %s123, %s126
      %p132 = scmp.eq.s32.totalorder %s15, 0
      %p133 = por %p131, %p132
      %p134 = scmp.ne.s32.totalorder %s123, %s126
      %p135 = scmp.eq.s32.totalorder %s20, 1
      %p136 = por %p134, %p135
      %p137 = scmp.ne.s32.totalorder %s126, %s127
      %p138 = scmp.eq.s32.totalorder %s20, 0
      %p139 = por %p137, %p138
      %p140 = scmp.ne.s32.totalorder %s126, %s127
      %p141 = scmp.eq.s32.totalorder %s21, 1
      %p142 = por %p140, %p141
      %p144 = scmp.ne.s32.totalorder %s127, %s143
      %p145 = scmp.eq.s32.totalorder %s21, 0
      %p146 = por %p144, %p145
      %p147 = scmp.le.s32.totalorder 1, %s15
      %p148 = scmp.lt.s32.totalorder %s15, 3
      %p149 = pnand %p147, %p148
      %p150 = pneg %p149
      // Predicated region
      $region9: #{tpu_custom_call.1} parent=5 // pred_check
        _
      $region10: #{tpu_custom_call.1} parent=5 // pred_check_branch
        %152 = sbr.rel (%p149) target = $region12
      $region11: #{tpu_custom_call.1} parent=5 // pred_region
        %s153 = ssub.s32 %s15, 1
      $region12: #{tpu_custom_call.1} parent=5 // pred_fallthru
        _
      %p154 = scmp.lt.s32.totalorder %s15, 2
      // Predicated region
      $region13: #{tpu_custom_call.1} parent=5 // pred_check
        %p155 = pneg %p154
      $region14: #{tpu_custom_call.1} parent=5 // pred_check_branch
        %157 = sbr.rel (%p155) target = $region16
      $region15: #{tpu_custom_call.1} parent=5 // pred_region
        // Predicated region
        $region17: #{tpu_custom_call.1} parent=15 // pred_check
          %p158 = pneg %p49
        $region18: #{tpu_custom_call.1} parent=15 // pred_check_branch
          %160 = sbr.rel (%p158) target = $region20
        $region19: #{tpu_custom_call.1} parent=15 // pred_region
          %s161 = sand.u32 %s39, 1
          %s162 = scalar_lea.sflag [#allocation3], %s161
          %s163 = sand.u32 %s39, 1
          %s164 = smul.addr %s163, 2
          %s165 = scalar_lea.vmem [#allocation2], %s164
          %s167 = ssub.s32 32, 32
          %168 = vsyncadd %s162, %s167
          %s169 = sadd.s32 %s23, %s22
          %s170 = smul.addr %s169, 32
          %s171 = scalar_lea.hbm %s0, %s170
          %s173 = sshll.u32 %s165, 4
          %s174 = int_to_ptr.vmem [resolvable:$true] %s173
          %176 = dma.hbm_to_vmem [thread:$0]  %s171, 32, %s174, %s162
        $region20: #{tpu_custom_call.1} parent=15 // pred_fallthru
          _
        // Predicated region
        $region21: #{tpu_custom_call.1} parent=15 // pred_check
          %p177 = pneg %p77
        $region22: #{tpu_custom_call.1} parent=15 // pred_check_branch
          %179 = sbr.rel (%p177) target = $region24
        $region23: #{tpu_custom_call.1} parent=15 // pred_region
          %s180 = sand.u32 %s15, 1
          %s181 = scalar_lea.sflag [#allocation5], %s180
          %s182 = sand.u32 %s67, 1
          %s183 = smul.addr %s182, 6
          %s184 = scalar_lea.vmem [#allocation4], %s183
          %s186 = ssub.s32 96, 96
          %187 = vsyncadd %s181, %s186
          %s188 = smul.addr %s22, 3
          %s189 = sadd.s32 %s23, %s188
          %s190 = smul.addr %s189, 32
          %s191 = scalar_lea.hbm %s1, %s190
          %s192 = sshll.u32 %s184, 4
          %s193 = int_to_ptr.vmem [resolvable:$true] %s192
          %198 = dma.hbm_to_vmem [thread:$0]  %s191, 96, %s193, %s181, 32, 32, 2
        $region24: #{tpu_custom_call.1} parent=15 // pred_fallthru
          _
        // Predicated region
        $region25: #{tpu_custom_call.1} parent=15 // pred_check
          %p199 = pneg %p105
        $region26: #{tpu_custom_call.1} parent=15 // pred_check_branch
          %201 = sbr.rel (%p199) target = $region28
        $region27: #{tpu_custom_call.1} parent=15 // pred_region
          %s202 = sand.u32 %s15, 1
          %s203 = scalar_lea.sflag [#allocation5], %s202
          %s204 = sand.u32 %s95, 1
          %s205 = smul.addr %s204, 6
          %s206 = scalar_lea.vmem [#allocation6], %s205
          %s208 = ssub.s32 96, 96
          %209 = vsyncadd %s203, %s208
          %s210 = smul.addr %s22, 3
          %s211 = sadd.s32 %s23, %s210
          %s212 = smul.addr %s211, 32
          %s213 = scalar_lea.hbm %s2, %s212
          %s214 = sshll.u32 %s206, 4
          %s215 = int_to_ptr.vmem [resolvable:$true] %s214
          %220 = dma.hbm_to_vmem [thread:$0]  %s213, 96, %s215, %s203, 32, 32, 2
        $region28: #{tpu_custom_call.1} parent=15 // pred_fallthru
          _
      $region16: #{tpu_custom_call.1} parent=5 // pred_fallthru
        _
      %p221 = scmp.le.s32.totalorder 1, %s15
      %p222 = scmp.lt.s32.totalorder %s15, 3
      %p223 = pnand %p221, %p222
      %p224 = pneg %p223
      // Predicated region
      $region29: #{tpu_custom_call.1} parent=5 // pred_check
        _
      $region30: #{tpu_custom_call.1} parent=5 // pred_check_branch
        %226 = sbr.rel (%p223) target = $region32
      $region31: #{tpu_custom_call.1} parent=5 // pred_region
        %s227 = ssub.s32 %s15, 1
        %s228 = sand.u32 %s42, 1
        %s229 = scalar_lea.sflag [#allocation3], %s228
        %s230 = sand.u32 %s42, 1
        %s231 = smul.addr %s230, 2
        %s232 = scalar_lea.vmem [#allocation2], %s231
        // Predicated region
        $region33: #{tpu_custom_call.1} parent=31 // pred_check
          %p233 = pneg %p55
        $region34: #{tpu_custom_call.1} parent=31 // pred_check_branch
          %235 = sbr.rel (%p233) target = $region36
        $region35: #{tpu_custom_call.1} parent=31 // pred_region
          %236 = dma.done %s229, 32
        $region36: #{tpu_custom_call.1} parent=31 // pred_fallthru
          _
        %s237 = sand.u32 %s20, 1
        %s238 = scalar_lea.sflag [#allocation5], %s237
        %s239 = sand.u32 %s70, 1
        %s240 = smul.addr %s239, 6
        %s241 = scalar_lea.vmem [#allocation4], %s240
        // Predicated region
        $region37: #{tpu_custom_call.1} parent=31 // pred_check
          %p242 = pneg %p83
        $region38: #{tpu_custom_call.1} parent=31 // pred_check_branch
          %244 = sbr.rel (%p242) target = $region40
        $region39: #{tpu_custom_call.1} parent=31 // pred_region
          %245 = dma.done %s238, 96
        $region40: #{tpu_custom_call.1} parent=31 // pred_fallthru
          _
        %s246 = sand.u32 %s20, 1
        %s247 = scalar_lea.sflag [#allocation5], %s246
        %s248 = sand.u32 %s98, 1
        %s249 = smul.addr %s248, 6
        %s250 = scalar_lea.vmem [#allocation6], %s249
        // Predicated region
        $region41: #{tpu_custom_call.1} parent=31 // pred_check
          %p251 = pneg %p111
        $region42: #{tpu_custom_call.1} parent=31 // pred_check_branch
          %253 = sbr.rel (%p251) target = $region44
        $region43: #{tpu_custom_call.1} parent=31 // pred_region
          %254 = dma.done %s247, 96
        $region44: #{tpu_custom_call.1} parent=31 // pred_fallthru
          _
        %s255 = sand.u32 %s42, 1
        %s256 = scalar_lea.sflag [#allocation3], %s255
        %s257 = sand.u32 %s42, 1
        %s258 = smul.addr %s257, 2
        %s259 = scalar_lea.vmem [#allocation2], %s258
        %p260 = pneg %p55
        %p261 = pneg %p52
        %s262 = sand.u32 %s20, 1
        %s263 = scalar_lea.sflag [#allocation5], %s262
        %s264 = sand.u32 %s70, 1
        %s265 = smul.addr %s264, 6
        %s266 = scalar_lea.vmem [#allocation4], %s265
        %p267 = pneg %p83
        %p268 = pneg %p80
        %s269 = sand.u32 %s20, 1
        %s270 = scalar_lea.sflag [#allocation5], %s269
        %s271 = sand.u32 %s98, 1
        %s272 = smul.addr %s271, 6
        %s273 = scalar_lea.vmem [#allocation6], %s272
        %p274 = pneg %p111
        %p275 = pneg %p108
        %p276 = pneg %p139
        %p277 = pneg %p136
        %p278 = scmp.lt.s32.totalorder %s24, 1
        %s279 = scalar_select %p278, %s24, 1
        %p280 = scmp.lt.s32.totalorder %s25, 0
        %s281 = scalar_select %p280, %s25, 0
        %s282 = sadd.s32 %s281, %s279
        %s283 = smul.addr %s282, 4
        %s284 = scalar_lea.vmem %s3, %s283
        %p285 = scmp.lt.s32.totalorder %s24, 1
        %s286 = scalar_select %p285, %s24, 1
        %p287 = scmp.lt.s32.totalorder %s25, 0
        %s288 = scalar_select %p287, %s25, 0
        %s289 = sadd.s32 %s288, %s286
        %s290 = smul.addr %s289, 4
        %s291 = scalar_lea.vmem %s3, %s290
        %v292 = vld [vmem:[%s232] sm:$0x3]
        %v293 = vsub.f32 1.0, %v292
        %v294 = vld [vmem:[%s250] sm:$0x3]
        %v295 = vld [vmem:[%s241] sm:$0x3]
        %v296 = vsub.f32 %v294, %v295
        %v297 = vand.u32 2147483647, %v296
        %v298 = vadd.f32 %v297, 0.0
        %v299 = vadd.f32 %v298, 0.0
        %v300 = vmul.f32 %v293, %v297
        %v301 = vadd.f32 %v300, 0.0
        %v302 = vadd.f32 %v301, 0.0
        %s303 = scalar_lea.vmem %s250, 2 [#allocation6]
        %v304 = vld [vmem:[%s303] sm:$0x3]
        %s305 = scalar_lea.vmem %s241, 2 [#allocation4]
        %v306 = vld [vmem:[%s305] sm:$0x3]
        %v307 = vsub.f32 %v304, %v306
        %v308 = vand.u32 2147483647, %v307
        %v309 = vadd.f32 %v308, 0.0
        %v310 = vadd.f32 %v299, %v309
        %v311 = vmul.f32 %v293, %v308
        %v312 = vadd.f32 %v311, 0.0
        %v313 = vadd.f32 %v302, %v312
        %s314 = scalar_lea.vmem %s250, 4 [#allocation6]
        %v315 = vld [vmem:[%s314] sm:$0x3]
        %s316 = scalar_lea.vmem %s241, 4 [#allocation4]
        %v317 = vld [vmem:[%s316] sm:$0x3]
        %v318 = vsub.f32 %v315, %v317
        %v319 = vand.u32 2147483647, %v318
        %v320 = vadd.f32 %v319, 0.0
        %v321 = vadd.f32 %v310, %v320
        %v322 = vmul.f32 %v293, %v319
        %v323 = vadd.f32 %v322, 0.0
        %v324 = vadd.f32 %v313, %v323
        %v325 = vadd.f32 %v293, 0.0
        %vm326 = vcmask 1041408
        %v327 = vsel %vm326, %v321, 0.0
        %v328 = vrot.slane %v327, 4
        %v329 = vadd.f32 %v327, %v328
        %v330 = vrot.slane %v329, 2
        %v331 = vadd.f32 %v329, %v330
        %v332 = vrot.slane %v331, 1
        %v333 = vadd.f32 %v331, %v332
        %v334 = vsel %vm326, %v324, 0.0
        %v335 = vrot.slane %v334, 4
        %v336 = vadd.f32 %v334, %v335
        %v337 = vrot.slane %v336, 2
        %v338 = vadd.f32 %v336, %v337
        %v339 = vrot.slane %v338, 1
        %v340 = vadd.f32 %v338, %v339
        %v341 = vsel %vm326, %v325, 0.0
        %v342 = vrot.slane %v341, 4
        %v343 = vadd.f32 %v341, %v342
        %v344 = vrot.slane %v343, 2
        %v345 = vadd.f32 %v343, %v344
        %v346 = vrot.slane %v345, 1
        %v347 = vadd.f32 %v345, %v346
        %vm348 = vcmask 1040384
        %v349 = vsel %vm348, %v333, %v340
        %v350 = vsel %vm326, %v349, %v347
        %351 = vst [vmem:[%s291] sm:$0x7] %v350
        %p352 = scmp.lt.s32.totalorder %s24, 1
        %s353 = scalar_select %p352, %s24, 1
        %p354 = scmp.lt.s32.totalorder %s25, 0
        %s355 = scalar_select %p354, %s25, 0
        %s356 = sadd.s32 %s355, %s353
        %s357 = smul.addr %s356, 4
        %s358 = scalar_lea.vmem %s3, %s357
        // Predicated region
        $region45: #{tpu_custom_call.1} parent=31 // pred_check
          %p359 = pneg %p136
        $region46: #{tpu_custom_call.1} parent=31 // pred_check_branch
          %361 = sbr.rel (%p359) target = $region48
        $region47: #{tpu_custom_call.1} parent=31 // pred_region
          _
        $region48: #{tpu_custom_call.1} parent=31 // pred_fallthru
          _
      $region32: #{tpu_custom_call.1} parent=5 // pred_fallthru
        _
      %p362 = scmp.le.s32.totalorder 2, %s15
      // Predicated region
      $region49: #{tpu_custom_call.1} parent=5 // pred_check
        %p363 = pneg %p362
      $region50: #{tpu_custom_call.1} parent=5 // pred_check_branch
        %365 = sbr.rel (%p363) target = $region52
      $region51: #{tpu_custom_call.1} parent=5 // pred_region
        %s366 = ssub.s32 %s15, 2
        // Predicated region
        $region53: #{tpu_custom_call.1} parent=51 // pred_check
          %p367 = pneg %p142
        $region54: #{tpu_custom_call.1} parent=51 // pred_check_branch
          %369 = sbr.rel (%p367) target = $region56
        $region55: #{tpu_custom_call.1} parent=51 // pred_region
          %p370 = scmp.lt.s32.totalorder %s26, 1
          %s371 = scalar_select %p370, %s26, 1
          %p372 = scmp.lt.s32.totalorder %s27, 0
          %s373 = scalar_select %p372, %s27, 0
          %s374 = sadd.s32 %s373, %s371
          %s375 = smul.addr %s374, 4
          %s376 = scalar_lea.vmem %s3, %s375
        $region56: #{tpu_custom_call.1} parent=51 // pred_fallthru
          _
      $region52: #{tpu_custom_call.1} parent=5 // pred_fallthru
        _
    $region6: #{tpu_custom_call.1} parent=1 // loop_footer
      %s19 = sadd.s32 1, %s15
    $region7: #{tpu_custom_call.1} parent=1 // loop_footer_branch
      %14 = sbr.rel target = $region3
    $region8: #{tpu_custom_call.1} parent=1 // loop_exit
      _
    %377 = vsyncpa [#allocation3], 1
    %s378 = scalar_lea.sflag [#allocation3], 1
    %379 = vsyncpa %s378, 1
    %380 = vsyncpa [#allocation5], 1
    %s381 = scalar_lea.sflag [#allocation5], 1
    %382 = vsyncpa %s381, 1

</llo_original>
